<compile_context>
chip_gen: v7x
topology: tpu7x:2x2x1
jax: 0.10.0
libtpu: 0.0.40
codegen_flags: <defaults>
</compile_context>

<pallas_src>
import functools

import jax
import jax.numpy as jnp
from jax import lax
from jax.experimental import pallas as pl
from jax.experimental.pallas import tpu as pltpu


def _grad3d_kernel(x_ref, o_ref, acc_ref, wsc_ref, hsc_ref, prev_ref, *,
                   penalty, D, H, W, R, rows, ragged,
                   inv_ny, inv_nx, inv_nz):
    """One grid step: fold the gradient-loss contribution of R rows into acc.

    x_ref:    (R, H*W) input tile (native dtype); row r = one (H, W) plane.
    o_ref:    (1, 1) f32 output (resident; written only at the last step).
    acc_ref:  (1, H*W) f32 per-lane partial sums (resident across steps).
    wsc_ref:  (1, H*W) f32 W-direction scale plane (inv_nz or 0), built once.
    hsc_ref:  (1, H*W) f32 H-direction scale plane (inv_nx or 0), built once.
    prev_ref: (1, H*W) f32 carried last plane of the previous block (D seam).
    """
    HW = H * W
    i = pl.program_id(0)

    @pl.when(i == 0)
    def _init():
        acc_ref[...] = jnp.zeros_like(acc_ref)
        prev_ref[...] = jnp.zeros_like(prev_ref)
        col = lax.broadcasted_iota(jnp.int32, (1, HW), 1)
        # W-direction ("dz"): neighbour at flat index col +/- 1 (lane roll).
        # Orientation-agnostic mask, computed once, folded with its scale.
        cw = pltpu.roll(col, HW - 1, axis=1)
        mw = (((cw == col + 1) & (col % W != W - 1)) |
              ((cw == col - 1) & (col % W != 0)))
        wsc_ref[...] = jnp.where(mw, inv_nz, 0.0).astype(jnp.float32)
        # H-direction ("dx"): neighbour at flat index col +/- W (lane roll).
        if H == 2:
            mh = col < (HW - W)          # both roll orientations coincide
        else:
            ch = pltpu.roll(col, HW - W, axis=1)
            mh = (((ch == col + W) & (col < HW - W)) |
                  ((ch == col - W) & (col >= W)))
        hsc_ref[...] = jnp.where(mh, inv_nx, 0.0).astype(jnp.float32)

    x = x_ref[...].astype(jnp.float32)                       # (R, HW)

    if ragged:
        # Rows past the end of the array hold undefined data -> select them to 0.
        r_full = lax.broadcasted_iota(jnp.int32, (R, HW), 0)
        x = jnp.where(r_full < rows - i * R, x, jnp.zeros_like(x))

    def pen(v):
        return v * v if penalty == 'l2' else jnp.abs(v)      # abs redundant for l2

    # Lane-direction diffs; lane validity lives in the (1, HW) scale planes.
    dz = pen(pltpu.roll(x, HW - 1, axis=1) - x)              # W-direction
    dx = pen(pltpu.roll(x, HW - W, axis=1) - x)              # H-direction

    # D-direction: partner plane = adjacent row via a sublane roll (XLU).
    dy = pen(x - pltpu.roll(x, 1, axis=0))

    # Per-row dy weights (inv_ny or 0) built on an (R, 1) iota, orientation-
    # agnostic w.r.t. the sublane-roll direction; kills the wrapped row,
    # volume starts and ragged padding.  All operands are finite, so the
    # broadcast multiply is NaN-safe.
    r1 = lax.broadcasted_iota(jnp.int32, (R, 1), 0)
    g1 = r1 + i * R                                          # global row index
    rr = pltpu.roll(r1, 1, axis=0)                           # partner row index
    up_ok = (rr == r1 - 1) & (g1 % D != 0)                   # partner above
    dn_ok = (rr == r1 + 1) & ((g1 + 1) % D != 0)             # partner below
    if ragged:
        up_ok = up_ok & (g1 < rows)
        dn_ok = dn_ok & (g1 + 1 < rows)
    keep_d = jnp.where(up_ok | dn_ok, inv_ny, 0.0).astype(jnp.float32)

    # Block-boundary seam: row 0 against the carried last plane of block i-1.
    seam_scale = jnp.where((i * R) % D == 0, 0.0, inv_ny)    # traced scalar
    dy_seam = pen(x[0:1, :] - prev_ref[...])                 # (1, HW)

    # Reduce over rows; accumulate per-lane partial sums in f32.
    dz_s = jnp.sum(dz, axis=0, keepdims=True)
    dx_s = jnp.sum(dx, axis=0, keepdims=True)
    dy_s = jnp.sum(dy * keep_d, axis=0, keepdims=True)

    acc_ref[...] = (acc_ref[...]
                    + dz_s * wsc_ref[...]
                    + dx_s * hsc_ref[...]
                    + dy_s
                    + dy_seam * seam_scale)

    # Carry this block's last plane for the next block's D seam.
    prev_ref[...] = x[R - 1:R, :]

    @pl.when(i == pl.num_programs(0) - 1)
    def _finalize():
        o_ref[...] = jnp.full((1, 1), jnp.sum(acc_ref[...]), dtype=jnp.float32)


def _pick_tiling():
    """Per-chip default (block_bytes, vmem_limit_bytes)."""
    vmem_cap = 64 * 1024 * 1024               # conservative (v7x-class) fallback
    try:
        vmem_cap = int(pltpu.get_tpu_info().vmem_capacity_bytes)
    except Exception:
        pass
    if vmem_cap >= 96 * 1024 * 1024:          # v5e / v6e class (128 MiB VMEM)
        return 12 * 1024 * 1024, 64 * 1024 * 1024
    return 6 * 1024 * 1024, 32 * 1024 * 1024  # v7x class (64 MiB VMEM)


def _choose_block_rows(rows, hw, itemsize, target_bytes):
    """Pick the row-block size R (always a multiple of 8)."""
    rows8 = -(-rows // 8) * 8
    max_rows = max(8, (target_bytes // max(1, hw * itemsize)) // 8 * 8)
    if rows8 <= max_rows:
        return rows8                          # whole array in one block
    best = 0
    r = 8
    while r <= max_rows:                      # prefer an exact divisor (no tail)
        if rows % r == 0:
            best = r
        r += 8
    if best >= max_rows // 2:
        return best
    return max_rows                           # ragged tail, masked in-kernel


def grad3d_loss(y_pred, y_true=None, penalty='l1', loss_mult=None, *,
                block_bytes=None):
    """Pallas equivalent of Grad3d(penalty, loss_mult)(y_pred, y_true)."""
    del y_true  # unused by the reference forward pass
    B, C, D, H, W = y_pred.shape
    if D < 2 or H < 2 or W < 2:
        raise ValueError("Grad3d requires every spatial dim >= 2 "
                         "(reference mean over an empty diff is undefined).")

    HW = H * W
    rows = B * C * D
    x = y_pred.reshape(rows, HW)              # lane-dense view, native dtype

    mult = 1.0 if loss_mult is None else float(loss_mult)
    scale = mult / 3.0
    inv_ny = scale / (B * C * (D - 1) * H * W)    # D-direction mean
    inv_nx = scale / (B * C * D * (H - 1) * W)    # H-direction mean
    inv_nz = scale / (B * C * D * H * (W - 1))    # W-direction mean

    default_block, default_vmem = _pick_tiling()
    if block_bytes is None:
        block_bytes = default_block
    R = _choose_block_rows(rows, HW, x.dtype.itemsize, block_bytes)
    grid_steps = pl.cdiv(rows, R)
    ragged = (rows % R) != 0
    vmem_need = 2 * R * HW * x.dtype.itemsize + 4 * 8 * HW * 4 + (2 << 20)
    vmem_limit = int(max(default_vmem, vmem_need))

    kernel = functools.partial(
        _grad3d_kernel, penalty=penalty, D=D, H=H, W=W, R=R, rows=rows,
        ragged=ragged, inv_ny=inv_ny, inv_nx=inv_nx, inv_nz=inv_nz)

    out = pl.pallas_call(
        kernel,
        out_shape=jax.ShapeDtypeStruct((1, 1), jnp.float32),
        grid_spec=pltpu.PrefetchScalarGridSpec(
            num_scalar_prefetch=0,
            grid=(grid_steps,),
            in_specs=[pl.BlockSpec((R, HW), lambda i: (i, 0))],
            # Same output block every step -> resident; written only at the end.
            out_specs=pl.BlockSpec((1, 1), lambda i: (0, 0)),
            scratch_shapes=[pltpu.VMEM((1, HW), jnp.float32),   # per-lane acc
                            pltpu.VMEM((1, HW), jnp.float32),   # W scale plane
                            pltpu.VMEM((1, HW), jnp.float32),   # H scale plane
                            pltpu.VMEM((1, HW), jnp.float32)]), # carried plane
        compiler_params=pltpu.CompilerParams(
            # TODO(synk): grid stays serial because of the carried D seam; a
            # halo-input + partial-sum variant would let v7x use both cores.
            dimension_semantics=("arbitrary",),
            vmem_limit_bytes=vmem_limit),
    )(x)
    return out[0, 0]


def _grad3d_ref(y_pred, penalty='l1', loss_mult=None):
    """Pure-JAX reference mirroring the PyTorch module."""
    y_pred = y_pred.astype(jnp.float32)
    dy = jnp.abs(y_pred[:, :, 1:, :, :] - y_pred[:, :, :-1, :, :])
    dx = jnp.abs(y_pred[:, :, :, 1:, :] - y_pred[:, :, :, :-1, :])
    dz = jnp.abs(y_pred[:, :, :, :, 1:] - y_pred[:, :, :, :, :-1])
    if penalty == 'l2':
        dy, dx, dz = dy * dy, dx * dx, dz * dz
    d = jnp.mean(dx) + jnp.mean(dy) + jnp.mean(dz)
    grad = d / 3.0
    if loss_mult is not None:
        grad = grad * loss_mult
    return grad


if __name__ == "__main__":
    key = jax.random.PRNGKey(0)
    k1, k2, k3, k4 = jax.random.split(key, 4)

    B, C, D, H, W = 2, 3, 8, 16, 16   # small NCDHW shapes (flow-field style)
    y_pred = jax.random.normal(k1, (B, C, D, H, W), dtype=jnp.float32)
    y_true = jax.random.normal(k2, (B, C, D, H, W), dtype=jnp.float32)

    # l1 penalty (module default), single-block fast path.
    out_l1 = jax.block_until_ready(grad3d_loss(y_pred, y_true, penalty='l1'))
    ref_l1 = _grad3d_ref(y_pred, penalty='l1')
    assert jnp.allclose(out_l1, ref_l1, rtol=1e-5, atol=1e-6), (out_l1, ref_l1)

    # l2 penalty with loss_mult.
    out_l2 = jax.block_until_ready(
        grad3d_loss(y_pred, y_true, penalty='l2', loss_mult=2.0))
    ref_l2 = _grad3d_ref(y_pred, penalty='l2', loss_mult=2.0)
    assert jnp.allclose(out_l2, ref_l2, rtol=1e-5, atol=1e-6), (out_l2, ref_l2)

    # bf16 streamed in native dtype, upcast to f32 inside the kernel.
    y_bf16 = y_pred.astype(jnp.bfloat16)
    out_bf = jax.block_until_ready(grad3d_loss(y_bf16, y_true, penalty='l1'))
    ref_bf = _grad3d_ref(y_bf16.astype(jnp.float32), penalty='l1')
    assert jnp.allclose(out_bf, ref_bf, rtol=1e-4, atol=1e-5), (out_bf, ref_bf)

    # Multi-step grid: small blocks so the carried D-seam plane and the
    # cross-step accumulator are exercised (block boundaries inside volumes).
    y_small = jax.random.normal(k3, (1, 2, 16, 8, 16), dtype=jnp.float32)
    out_ms = jax.block_until_ready(
        grad3d_loss(y_small, None, penalty='l2', loss_mult=0.5,
                    block_bytes=4 * 1024))
    ref_ms = _grad3d_ref(y_small, penalty='l2', loss_mult=0.5)
    assert jnp.allclose(out_ms, ref_ms, rtol=1e-5, atol=1e-6), (out_ms, ref_ms)

    # Ragged grid: rows (= B*C*D = 21) has no multiple-of-8 divisor, so the
    # last block is partial and masked in-kernel.
    y_rag = jax.random.normal(k4, (1, 3, 7, 8, 24), dtype=jnp.float32)
    out_rg = jax.block_until_ready(
        grad3d_loss(y_rag, None, penalty='l1', block_bytes=8 * 192 * 4))
    ref_rg = _grad3d_ref(y_rag, penalty='l1')
    assert jnp.allclose(out_rg, ref_rg, rtol=1e-5, atol=1e-6), (out_rg, ref_rg)

    print("KERNEL_OK")
</pallas_src>

<mosaic_0001>
module attributes {stable_mosaic.version = 11 : i64} {
  func.func @_grad3d_kernel(%arg0: i32, %arg1: memref<48x256xf32, #tpu.memory_space<vmem>>, %arg2: memref<1x1xf32, #tpu.memory_space<vmem>>, %arg3: memref<1x256xf32, #tpu.memory_space<vmem>>, %arg4: memref<1x256xf32, #tpu.memory_space<vmem>>, %arg5: memref<1x256xf32, #tpu.memory_space<vmem>>, %arg6: memref<1x256xf32, #tpu.memory_space<vmem>>) attributes {dimension_semantics = [#tpu.dimension_semantics<arbitrary>], iteration_bounds = array<i64: 1>, scalar_prefetch = 0 : i64, scratch_operands = 4 : i64, tpu.core_type = #tpu.core_type<tc>, window_params = [{transform_indices = @transform_0, window_bounds = array<i64: 48, 256>}, {pipeline_mode = #tpu.pipeline_mode<synchronous>, transform_indices = @transform_1, window_bounds = array<i64: 1, 1>}]} {
    %c0_i32 = arith.constant 0 : i32
    %0 = arith.cmpi eq, %arg0, %c0_i32 : i32
    %1 = arith.extui %0 : i1 to i32
    %c0_i32_0 = arith.constant 0 : i32
    %2 = arith.cmpi ne, %1, %c0_i32_0 : i32
    scf.if %2 {
      %cst_47 = arith.constant 0.000000e+00 : f32
      %110 = vector.broadcast %cst_47 : f32 to vector<1x256xf32>
      %c0_48 = arith.constant 0 : index
      %c0_49 = arith.constant 0 : index
      %111 = vector.load %arg3[%c0_48, %c0_49] : memref<1x256xf32, #tpu.memory_space<vmem>>, vector<1x256xf32>
      tpu.vector_store %arg3[%c0_48, %c0_49], %110 {strides = array<i32>} : memref<1x256xf32, #tpu.memory_space<vmem>>, vector<1x256xf32>,
      %cst_50 = arith.constant 0.000000e+00 : f32
      %112 = vector.broadcast %cst_50 : f32 to vector<1x256xf32>
      %c0_51 = arith.constant 0 : index
      %c0_52 = arith.constant 0 : index
      %113 = vector.load %arg6[%c0_51, %c0_52] : memref<1x256xf32, #tpu.memory_space<vmem>>, vector<1x256xf32>
      tpu.vector_store %arg6[%c0_51, %c0_52], %112 {strides = array<i32>} : memref<1x256xf32, #tpu.memory_space<vmem>>, vector<1x256xf32>,
      %114 = tpu.iota {dimensions = array<i32: 1>} : vector<1x256xi32>
      %c255_i32_53 = arith.constant 255 : i32
      %115 = tpu.dynamic_rotate %114 by %c255_i32_53 dim 1 : vector<1x256xi32>, i32 -> vector<1x256xi32>
      %c1_i32_54 = arith.constant 1 : i32
      %116 = vector.broadcast %c1_i32_54 : i32 to vector<1x256xi32>
      %117 = arith.addi %114, %116 : vector<1x256xi32>
      %118 = arith.cmpi eq, %115, %117 : vector<1x256xi32>
      %c16_i32 = arith.constant 16 : i32
      %c0_i32_55 = arith.constant 0 : i32
      %119 = arith.cmpi eq, %c16_i32, %c0_i32_55 : i32
      %c1_i32_56 = arith.constant 1 : i32
      %120 = arith.select %119, %c1_i32_56, %c16_i32 : i32
      %121 = vector.broadcast %120 : i32 to vector<1x256xi32>
      %122 = arith.remsi %114, %121 : vector<1x256xi32>
      %c0_i32_57 = arith.constant 0 : i32
      %123 = vector.broadcast %c0_i32_57 : i32 to vector<1x256xi32>
      %124 = arith.cmpi ne, %122, %123 : vector<1x256xi32>
      %c0_i32_58 = arith.constant 0 : i32
      %125 = vector.broadcast %c0_i32_58 : i32 to vector<1x256xi32>
      %126 = arith.cmpi slt, %122, %125 : vector<1x256xi32>
      %c0_i32_59 = arith.constant 0 : i32
      %127 = arith.cmpi slt, %120, %c0_i32_59 : i32
      %128 = vector.broadcast %127 : i1 to vector<1x256xi1>
      %129 = vector.broadcast %128 : vector<1x256xi1> to vector<1x256xi1>
      %130 = arith.xori %126, %129 : vector<1x256xi1>
      %131 = arith.andi %130, %124 : vector<1x256xi1>
      %132 = vector.broadcast %120 : i32 to vector<1x256xi32>
      %133 = arith.addi %122, %132 : vector<1x256xi32>
      %134 = arith.select %131, %133, %122 : vector<1x256xi1>, vector<1x256xi32>
      %c15_i32 = arith.constant 15 : i32
      %135 = vector.broadcast %c15_i32 : i32 to vector<1x256xi32>
      %136 = arith.cmpi ne, %134, %135 : vector<1x256xi32>
      %137 = arith.andi %118, %136 : vector<1x256xi1>
      %c1_i32_60 = arith.constant 1 : i32
      %138 = vector.broadcast %c1_i32_60 : i32 to vector<1x256xi32>
      %139 = arith.subi %114, %138 : vector<1x256xi32>
      %140 = arith.cmpi eq, %115, %139 : vector<1x256xi32>
      %c16_i32_61 = arith.constant 16 : i32
      %c0_i32_62 = arith.constant 0 : i32
      %141 = arith.cmpi eq, %c16_i32_61, %c0_i32_62 : i32
      %c1_i32_63 = arith.constant 1 : i32
      %142 = arith.select %141, %c1_i32_63, %c16_i32_61 : i32
      %143 = vector.broadcast %142 : i32 to vector<1x256xi32>
      %144 = arith.remsi %114, %143 : vector<1x256xi32>
      %c0_i32_64 = arith.constant 0 : i32
      %145 = vector.broadcast %c0_i32_64 : i32 to vector<1x256xi32>
      %146 = arith.cmpi ne, %144, %145 : vector<1x256xi32>
      %c0_i32_65 = arith.constant 0 : i32
      %147 = vector.broadcast %c0_i32_65 : i32 to vector<1x256xi32>
      %148 = arith.cmpi slt, %144, %147 : vector<1x256xi32>
      %c0_i32_66 = arith.constant 0 : i32
      %149 = arith.cmpi slt, %142, %c0_i32_66 : i32
      %150 = vector.broadcast %149 : i1 to vector<1x256xi1>
      %151 = vector.broadcast %150 : vector<1x256xi1> to vector<1x256xi1>
      %152 = arith.xori %148, %151 : vector<1x256xi1>
      %153 = arith.andi %152, %146 : vector<1x256xi1>
      %154 = vector.broadcast %142 : i32 to vector<1x256xi32>
      %155 = arith.addi %144, %154 : vector<1x256xi32>
      %156 = arith.select %153, %155, %144 : vector<1x256xi1>, vector<1x256xi32>
      %c0_i32_67 = arith.constant 0 : i32
      %157 = vector.broadcast %c0_i32_67 : i32 to vector<1x256xi32>
      %158 = arith.cmpi ne, %156, %157 : vector<1x256xi32>
      %159 = arith.andi %140, %158 : vector<1x256xi1>
      %160 = arith.ori %137, %159 : vector<1x256xi1>
      %cst_68 = arith.constant 2.89351847E-5 : f32
      %cst_69 = arith.constant 0.000000e+00 : f32
      %161 = vector.broadcast %cst_68 : f32 to vector<1x256xf32>
      %162 = vector.broadcast %cst_69 : f32 to vector<1x256xf32>
      %163 = arith.select %160, %161, %162 : vector<1x256xi1>, vector<1x256xf32>
      %c0_70 = arith.constant 0 : index
      %c0_71 = arith.constant 0 : index
      %164 = vector.load %arg4[%c0_70, %c0_71] : memref<1x256xf32, #tpu.memory_space<vmem>>, vector<1x256xf32>
      tpu.vector_store %arg4[%c0_70, %c0_71], %163 {strides = array<i32>} : memref<1x256xf32, #tpu.memory_space<vmem>>, vector<1x256xf32>,
      %c240_i32_72 = arith.constant 240 : i32
      %165 = tpu.dynamic_rotate %114 by %c240_i32_72 dim 1 : vector<1x256xi32>, i32 -> vector<1x256xi32>
      %c16_i32_73 = arith.constant 16 : i32
      %166 = vector.broadcast %c16_i32_73 : i32 to vector<1x256xi32>
      %167 = arith.addi %114, %166 : vector<1x256xi32>
      %168 = arith.cmpi eq, %165, %167 : vector<1x256xi32>
      %c240_i32_74 = arith.constant 240 : i32
      %169 = vector.broadcast %c240_i32_74 : i32 to vector<1x256xi32>
      %170 = arith.cmpi slt, %114, %169 : vector<1x256xi32>
      %171 = arith.andi %168, %170 : vector<1x256xi1>
      %c16_i32_75 = arith.constant 16 : i32
      %172 = vector.broadcast %c16_i32_75 : i32 to vector<1x256xi32>
      %173 = arith.subi %114, %172 : vector<1x256xi32>
      %174 = arith.cmpi eq, %165, %173 : vector<1x256xi32>
      %c16_i32_76 = arith.constant 16 : i32
      %175 = vector.broadcast %c16_i32_76 : i32 to vector<1x256xi32>
      %176 = arith.cmpi sge, %114, %175 : vector<1x256xi32>
      %177 = arith.andi %174, %176 : vector<1x256xi1>
      %178 = arith.ori %171, %177 : vector<1x256xi1>
      %cst_77 = arith.constant 2.89351847E-5 : f32
      %cst_78 = arith.constant 0.000000e+00 : f32
      %179 = vector.broadcast %cst_77 : f32 to vector<1x256xf32>
      %180 = vector.broadcast %cst_78 : f32 to vector<1x256xf32>
      %181 = arith.select %178, %179, %180 : vector<1x256xi1>, vector<1x256xf32>
      %c0_79 = arith.constant 0 : index
      %c0_80 = arith.constant 0 : index
      %182 = vector.load %arg5[%c0_79, %c0_80] : memref<1x256xf32, #tpu.memory_space<vmem>>, vector<1x256xf32>
      tpu.vector_store %arg5[%c0_79, %c0_80], %181 {strides = array<i32>} : memref<1x256xf32, #tpu.memory_space<vmem>>, vector<1x256xf32>,
    } else {
    }
    %c0 = arith.constant 0 : index
    %c0_1 = arith.constant 0 : index
    %3 = vector.load %arg1[%c0, %c0_1] : memref<48x256xf32, #tpu.memory_space<vmem>>, vector<48x256xf32>
    %c255_i32 = arith.constant 255 : i32
    %4 = tpu.dynamic_rotate %3 by %c255_i32 dim 1 : vector<48x256xf32>, i32 -> vector<48x256xf32>
    %5 = arith.subf %4, %3 : vector<48x256xf32>
    %6 = math.absf %5 : vector<48x256xf32>
    %c240_i32 = arith.constant 240 : i32
    %7 = tpu.dynamic_rotate %3 by %c240_i32 dim 1 : vector<48x256xf32>, i32 -> vector<48x256xf32>
    %8 = arith.subf %7, %3 : vector<48x256xf32>
    %9 = math.absf %8 : vector<48x256xf32>
    %c1_i32 = arith.constant 1 : i32
    %10 = tpu.dynamic_rotate %3 by %c1_i32 dim 0 : vector<48x256xf32>, i32 -> vector<48x256xf32>
    %11 = arith.subf %3, %10 : vector<48x256xf32>
    %12 = math.absf %11 : vector<48x256xf32>
    %13 = tpu.iota {dimensions = array<i32: 0>} : vector<48x1xi32>
    %c48_i32 = arith.constant 48 : i32
    %14 = arith.muli %arg0, %c48_i32 : i32
    %15 = vector.broadcast %14 : i32 to vector<48x1xi32>
    %16 = arith.addi %13, %15 : vector<48x1xi32>
    %c1_i32_2 = arith.constant 1 : i32
    %17 = tpu.dynamic_rotate %13 by %c1_i32_2 dim 0 : vector<48x1xi32>, i32 -> vector<48x1xi32>
    %c1_i32_3 = arith.constant 1 : i32
    %18 = vector.broadcast %c1_i32_3 : i32 to vector<48x1xi32>
    %19 = arith.subi %13, %18 : vector<48x1xi32>
    %20 = arith.cmpi eq, %17, %19 : vector<48x1xi32>
    %c8_i32 = arith.constant 8 : i32
    %c0_i32_4 = arith.constant 0 : i32
    %21 = arith.cmpi eq, %c8_i32, %c0_i32_4 : i32
    %c1_i32_5 = arith.constant 1 : i32
    %22 = arith.select %21, %c1_i32_5, %c8_i32 : i32
    %23 = vector.broadcast %22 : i32 to vector<48x1xi32>
    %24 = arith.remsi %16, %23 : vector<48x1xi32>
    %c0_i32_6 = arith.constant 0 : i32
    %25 = vector.broadcast %c0_i32_6 : i32 to vector<48x1xi32>
    %26 = arith.cmpi ne, %24, %25 : vector<48x1xi32>
    %c0_i32_7 = arith.constant 0 : i32
    %27 = vector.broadcast %c0_i32_7 : i32 to vector<48x1xi32>
    %28 = arith.cmpi slt, %24, %27 : vector<48x1xi32>
    %c0_i32_8 = arith.constant 0 : i32
    %29 = arith.cmpi slt, %22, %c0_i32_8 : i32
    %30 = vector.broadcast %29 : i1 to vector<48x1xi1>
    %31 = vector.broadcast %30 : vector<48x1xi1> to vector<48x1xi1>
    %32 = arith.xori %28, %31 : vector<48x1xi1>
    %33 = arith.andi %32, %26 : vector<48x1xi1>
    %34 = vector.broadcast %22 : i32 to vector<48x1xi32>
    %35 = arith.addi %24, %34 : vector<48x1xi32>
    %36 = arith.select %33, %35, %24 : vector<48x1xi1>, vector<48x1xi32>
    %c0_i32_9 = arith.constant 0 : i32
    %37 = vector.broadcast %c0_i32_9 : i32 to vector<48x1xi32>
    %38 = arith.cmpi ne, %36, %37 : vector<48x1xi32>
    %39 = arith.andi %20, %38 : vector<48x1xi1>
    %c1_i32_10 = arith.constant 1 : i32
    %40 = vector.broadcast %c1_i32_10 : i32 to vector<48x1xi32>
    %41 = arith.addi %13, %40 : vector<48x1xi32>
    %42 = arith.cmpi eq, %17, %41 : vector<48x1xi32>
    %c1_i32_11 = arith.constant 1 : i32
    %43 = vector.broadcast %c1_i32_11 : i32 to vector<48x1xi32>
    %44 = arith.addi %16, %43 : vector<48x1xi32>
    %c8_i32_12 = arith.constant 8 : i32
    %c0_i32_13 = arith.constant 0 : i32
    %45 = arith.cmpi eq, %c8_i32_12, %c0_i32_13 : i32
    %c1_i32_14 = arith.constant 1 : i32
    %46 = arith.select %45, %c1_i32_14, %c8_i32_12 : i32
    %47 = vector.broadcast %46 : i32 to vector<48x1xi32>
    %48 = arith.remsi %44, %47 : vector<48x1xi32>
    %c0_i32_15 = arith.constant 0 : i32
    %49 = vector.broadcast %c0_i32_15 : i32 to vector<48x1xi32>
    %50 = arith.cmpi ne, %48, %49 : vector<48x1xi32>
    %c0_i32_16 = arith.constant 0 : i32
    %51 = vector.broadcast %c0_i32_16 : i32 to vector<48x1xi32>
    %52 = arith.cmpi slt, %48, %51 : vector<48x1xi32>
    %c0_i32_17 = arith.constant 0 : i32
    %53 = arith.cmpi slt, %46, %c0_i32_17 : i32
    %54 = vector.broadcast %53 : i1 to vector<48x1xi1>
    %55 = vector.broadcast %54 : vector<48x1xi1> to vector<48x1xi1>
    %56 = arith.xori %52, %55 : vector<48x1xi1>
    %57 = arith.andi %56, %50 : vector<48x1xi1>
    %58 = vector.broadcast %46 : i32 to vector<48x1xi32>
    %59 = arith.addi %48, %58 : vector<48x1xi32>
    %60 = arith.select %57, %59, %48 : vector<48x1xi1>, vector<48x1xi32>
    %c0_i32_18 = arith.constant 0 : i32
    %61 = vector.broadcast %c0_i32_18 : i32 to vector<48x1xi32>
    %62 = arith.cmpi ne, %60, %61 : vector<48x1xi32>
    %63 = arith.andi %42, %62 : vector<48x1xi1>
    %64 = arith.ori %39, %63 : vector<48x1xi1>
    %cst = arith.constant 3.10019859E-5 : f32
    %cst_19 = arith.constant 0.000000e+00 : f32
    %65 = vector.broadcast %cst : f32 to vector<48x1xf32>
    %66 = vector.broadcast %cst_19 : f32 to vector<48x1xf32>
    %67 = arith.select %64, %65, %66 : vector<48x1xi1>, vector<48x1xf32>
    %c48_i32_20 = arith.constant 48 : i32
    %68 = arith.muli %arg0, %c48_i32_20 : i32
    %c8_i32_21 = arith.constant 8 : i32
    %c0_i32_22 = arith.constant 0 : i32
    %69 = arith.cmpi eq, %c8_i32_21, %c0_i32_22 : i32
    %c1_i32_23 = arith.constant 1 : i32
    %70 = arith.select %69, %c1_i32_23, %c8_i32_21 : i32
    %71 = arith.remsi %68, %70 : i32
    %c0_i32_24 = arith.constant 0 : i32
    %72 = arith.cmpi ne, %71, %c0_i32_24 : i32
    %c0_i32_25 = arith.constant 0 : i32
    %73 = arith.cmpi slt, %71, %c0_i32_25 : i32
    %c0_i32_26 = arith.constant 0 : i32
    %74 = arith.cmpi slt, %70, %c0_i32_26 : i32
    %75 = arith.xori %73, %74 : i1
    %76 = arith.andi %75, %72 : i1
    %77 = arith.addi %71, %70 : i32
    %78 = arith.select %76, %77, %71 : i32
    %c0_i32_27 = arith.constant 0 : i32
    %79 = arith.cmpi eq, %78, %c0_i32_27 : i32
    %cst_28 = arith.constant 0.000000e+00 : f32
    %cst_29 = arith.constant 3.10019859E-5 : f32
    %80 = arith.select %79, %cst_28, %cst_29 : f32
    %81 = vector.extract_strided_slice %3 {offsets = [0, 0], sizes = [1, 256], strides = [1, 1]} : vector<48x256xf32> to vector<1x256xf32>
    %c0_30 = arith.constant 0 : index
    %c0_31 = arith.constant 0 : index
    %82 = vector.load %arg6[%c0_30, %c0_31] : memref<1x256xf32, #tpu.memory_space<vmem>>, vector<1x256xf32>
    %83 = arith.subf %81, %82 : vector<1x256xf32>
    %84 = math.absf %83 : vector<1x256xf32>
    %cst_32 = arith.constant dense<0.000000e+00> : vector<256xf32>
    %85 = vector.multi_reduction <add>, %6, %cst_32 [0] : vector<48x256xf32> to vector<256xf32>
    %86 = vector.shape_cast %85 : vector<256xf32> to vector<1x256xf32>
    %cst_33 = arith.constant dense<0.000000e+00> : vector<256xf32>
    %87 = vector.multi_reduction <add>, %9, %cst_33 [0] : vector<48x256xf32> to vector<256xf32>
    %88 = vector.shape_cast %87 : vector<256xf32> to vector<1x256xf32>
    %89 = vector.broadcast %67 : vector<48x1xf32> to vector<48x256xf32>
    %90 = arith.mulf %12, %89 : vector<48x256xf32>
    %cst_34 = arith.constant dense<0.000000e+00> : vector<256xf32>
    %91 = vector.multi_reduction <add>, %90, %cst_34 [0] : vector<48x256xf32> to vector<256xf32>
    %92 = vector.shape_cast %91 : vector<256xf32> to vector<1x256xf32>
    %c0_35 = arith.constant 0 : index
    %c0_36 = arith.constant 0 : index
    %93 = vector.load %arg3[%c0_35, %c0_36] : memref<1x256xf32, #tpu.memory_space<vmem>>, vector<1x256xf32>
    %c0_37 = arith.constant 0 : index
    %c0_38 = arith.constant 0 : index
    %94 = vector.load %arg4[%c0_37, %c0_38] : memref<1x256xf32, #tpu.memory_space<vmem>>, vector<1x256xf32>
    %95 = arith.mulf %86, %94 : vector<1x256xf32>
    %96 = arith.addf %93, %95 : vector<1x256xf32>
    %c0_39 = arith.constant 0 : index
    %c0_40 = arith.constant 0 : index
    %97 = vector.load %arg5[%c0_39, %c0_40] : memref<1x256xf32, #tpu.memory_space<vmem>>, vector<1x256xf32>
    %98 = arith.mulf %88, %97 : vector<1x256xf32>
    %99 = arith.addf %96, %98 : vector<1x256xf32>
    %100 = arith.addf %99, %92 : vector<1x256xf32>
    %101 = vector.broadcast %80 : f32 to vector<1x256xf32>
    %102 = arith.mulf %84, %101 : vector<1x256xf32>
    %103 = arith.addf %100, %102 : vector<1x256xf32>
    %c0_41 = arith.constant 0 : index
    %c0_42 = arith.constant 0 : index
    %104 = vector.load %arg3[%c0_41, %c0_42] : memref<1x256xf32, #tpu.memory_space<vmem>>, vector<1x256xf32>
    tpu.vector_store %arg3[%c0_41, %c0_42], %103 {strides = array<i32>} : memref<1x256xf32, #tpu.memory_space<vmem>>, vector<1x256xf32>,
    %105 = vector.extract_strided_slice %3 {offsets = [47, 0], sizes = [1, 256], strides = [1, 1]} : vector<48x256xf32> to vector<1x256xf32>
    %c0_43 = arith.constant 0 : index
    %c0_44 = arith.constant 0 : index
    %106 = vector.load %arg6[%c0_43, %c0_44] : memref<1x256xf32, #tpu.memory_space<vmem>>, vector<1x256xf32>
    tpu.vector_store %arg6[%c0_43, %c0_44], %105 {strides = array<i32>} : memref<1x256xf32, #tpu.memory_space<vmem>>, vector<1x256xf32>,
    %c0_i32_45 = arith.constant 0 : i32
    %107 = arith.cmpi eq, %arg0, %c0_i32_45 : i32
    %108 = arith.extui %107 : i1 to i32
    %c0_i32_46 = arith.constant 0 : i32
    %109 = arith.cmpi ne, %108, %c0_i32_46 : i32
    scf.if %109 {
      %c0_47 = arith.constant 0 : index
      %c0_48 = arith.constant 0 : index
      %110 = vector.load %arg3[%c0_47, %c0_48] : memref<1x256xf32, #tpu.memory_space<vmem>>, vector<1x256xf32>
      %111 = vector.shape_cast %110 : vector<1x256xf32> to vector<1x1x256xf32>
      %cst_49 = arith.constant dense<0.000000e+00> : vector<1xf32>
      %112 = vector.multi_reduction <add>, %111, %cst_49 [1, 2] : vector<1x1x256xf32> to vector<1xf32>
      %113 = vector.shape_cast %112 : vector<1xf32> to vector<1x1x1xf32>
      %114 = vector.extract %113[0, 0, 0] : f32 from vector<1x1x1xf32>
      %115 = vector.broadcast %114 : f32 to vector<1x1xf32>
      %c0_50 = arith.constant 0 : index
      %c0_51 = arith.constant 0 : index
      %116 = vector.load %arg2[%c0_50, %c0_51] : memref<1x1xf32, #tpu.memory_space<vmem>>, vector<1x1xf32>
      tpu.vector_store %arg2[%c0_50, %c0_51], %115 {strides = array<i32>} : memref<1x1xf32, #tpu.memory_space<vmem>>, vector<1x1xf32>,
    } else {
    }
    return
  }
  func.func @transform_0(%arg0: i32) -> (i32, i32) {
    %c0_i32 = arith.constant 0 : i32
    %c0_i32_0 = arith.constant 0 : i32
    return %arg0, %c0_i32 : i32, i32
  }
  func.func @transform_1(%arg0: i32) -> (i32, i32) {
    %c0_i32 = arith.constant 0 : i32
    %c0_i32_0 = arith.constant 0 : i32
    %c0_i32_1 = arith.constant 0 : i32
    return %c0_i32, %c0_i32_0 : i32, i32
  }
}

</mosaic_0001>

<llo_original>
// kernel: tpu_custom_call.1
$region0: #{tpu_custom_call.1}
  #allocation0 [shape = 'u32[]', space=smem, size = 0x4, offset = 0x4, fixed_abs, tag = 'smem constant byte address 0x4 - core index']
  #allocation1 [shape = 'u32[144,128]{1,0:T(1,128)}', space=vmem, size = 0x12000, scoped, tag = 'internal scratch']
  #allocation2 [shape = 'f32[1,256]{1,0:T(1,128)}', space=vmem, size = 0x400, scoped, tag = 'scratch operand']
  #allocation3 [shape = 'f32[1,256]{1,0:T(1,128)}', space=vmem, size = 0x400, scoped, tag = 'scratch operand']
  #allocation4 [shape = 'f32[1,256]{1,0:T(1,128)}', space=vmem, size = 0x400, scoped, tag = 'scratch operand']
  #allocation5 [shape = 'f32[1,256]{1,0:T(1,128)}', space=vmem, size = 0x400, scoped, tag = 'scratch operand']
  %s0 = inlined_call_operand.hbm [shape: f32[48,256], index: 0, kind: input, shape index: {}]
  %s1 = inlined_call_operand.hbm [shape: f32[1,1], index: 1, kind: output, shape index: {}]
  %s2 = sld [smem:[#allocation0]]
  $region26: #{tpu_custom_call.1} parent=0
    _
  %s4 = ssub.s32 1, %s2
  %s5 = scalar_select 0, %s4, %s2
  $region1: #{tpu_custom_call.1} parent=0
    #allocation6 [shape = 'u8[49152]{0}', space=vmem, size = 0xc000, scoped, tag = 'input window, operand 0, single buffered']
    #allocation7 [shape = 's32[1]{0}', space=sflag, size = 0x4, scoped, tag = 'scoped memory for tpu_custom_call.1']
    #allocation8 [shape = 's32[1]{0}', space=sflag, size = 0x4, scoped, tag = 'scoped memory for tpu_custom_call.1']
    #allocation9 [shape = 'u8[512]{0}', space=vmem, size = 0x400, scoped, tag = 'output window, operand 0, single buffered']
    %6 = vsyncpa [#allocation7], 0
    %7 = vsyncpa [#allocation8], 0
    // Predicated region
    $region2: #{tpu_custom_call.1} parent=1 // pred_check
      _
    $region3: #{tpu_custom_call.1} parent=1 // pred_check_branch
      %9 = sbr.rel (0) target = $region5
    $region4: #{tpu_custom_call.1} parent=1 // pred_region
      %s11 = ssub.s32 1536, 1536
      %12 = vsyncadd [#allocation7], %s11
      %s13 = sshll.u32 [#allocation6], 4
      %s14 = int_to_ptr.vmem [resolvable:$true] %s13
      %19 = dma.hbm_to_vmem [thread:$0]  %s0, 1536, %s14, [#allocation7], 256, 256, 16
    $region5: #{tpu_custom_call.1} parent=1 // pred_fallthru
      _
    // Predicated region
    $region6: #{tpu_custom_call.1} parent=1 // pred_check
      _
    $region7: #{tpu_custom_call.1} parent=1 // pred_check_branch
      %21 = sbr.rel (0) target = $region9
    $region8: #{tpu_custom_call.1} parent=1 // pred_region
      %22 = dma.done [#allocation7], 1536
    $region9: #{tpu_custom_call.1} parent=1 // pred_fallthru
      _
    %p23 = scmp.eq.s32.totalorder 0, 0
    // Predicated region
    $region10: #{tpu_custom_call.1} parent=1 // pred_check
      %p24 = pneg %p23
    $region11: #{tpu_custom_call.1} parent=1 // pred_check_branch
      %26 = sbr.rel (%p24) target = $region13
    $region12: #{tpu_custom_call.1} parent=1 // pred_region
      %v27 = vlaneseq
      %vm28 = vcmp.ge.s32.totalorder %v27, 0
      %vm29 = vcmp.lt.s32.totalorder %v27, 256
      %vm30 = vmand %vm28, %vm29
      %31 = vst.msk [vmem:[#allocation2] sm:$0x3] %vm30, 0.0
      %32 = vst.msk [vmem:[#allocation5] sm:$0x3] %vm30, 0.0
      %v33 = vlaneseq
      %v34 = vand.u32 %v33, 127
      %v35 = vadd.s32 %v34, 128
      %36 = vrot.lane.b32.xlu0 %v34, 127
      %v37 = vpop.permute.xlu0 %36
      %38 = vrot.lane.b32.xlu0 %v35, 127
      %v39 = vpop.permute.xlu0 %38
      %vm40 = vcmp.lt.s32.totalorder %v34, 127
      %v41 = vsel %vm40, %v37, %v39
      %v42 = vsel %vm40, %v39, %v37
      %v43 = vadd.s32 %v34, 1
      %v44 = vadd.s32 %v35, 1
      %vm45 = vcmp.eq.s32.totalorder %v41, %v43
      %vm46 = vcmp.eq.s32.totalorder %v42, %v44
      %vm47 = vcmp.lt.s32.totalorder %v34, 0
      %v48 = vsub.s32 0, %v34
      %v49 = vsel %vm47, %v48, %v34
      %v50 = vshrl.u32 %v49, 4
      %v51 = vand.u32 %v49, 15
      %v52 = vsub.s32 0, %v51
      %v53 = vsel %vm47, %v52, %v51
      %vm54 = vcmp.lt.s32.totalorder %v35, 0
      %v55 = vsub.s32 0, %v35
      %v56 = vsel %vm54, %v55, %v35
      %v57 = vshrl.u32 %v56, 4
      %v58 = vand.u32 %v56, 15
      %v59 = vsub.s32 0, %v58
      %v60 = vsel %vm54, %v59, %v58
      %vm61 = vcmp.ne.s32.totalorder %v53, 0
      %vm62 = vcmp.ne.s32.totalorder %v60, 0
      %vm63 = vcmp.lt.s32.totalorder %v53, 0
      %vm64 = vcmp.lt.s32.totalorder %v60, 0
      %vm65 = vmand %vm63, %vm61
      %vm66 = vmand %vm64, %vm62
      %v67 = vadd.s32 %v53, 16
      %v68 = vadd.s32 %v60, 16
      %v69 = vsel %vm65, %v67, %v53
      %v70 = vsel %vm66, %v68, %v60
      %vm71 = vcmp.ne.s32.totalorder %v69, 15
      %vm72 = vcmp.ne.s32.totalorder %v70, 15
      %vm73 = vmand %vm45, %vm71
      %vm74 = vmand %vm46, %vm72
      %v75 = vsub.s32 %v34, 1
      %v76 = vsub.s32 %v35, 1
      %vm77 = vcmp.eq.s32.totalorder %v41, %v75
      %vm78 = vcmp.eq.s32.totalorder %v42, %v76
      %vm79 = vcmp.ne.s32.totalorder %v69, 0
      %vm80 = vcmp.ne.s32.totalorder %v70, 0
      %vm81 = vmand %vm77, %vm79
      %vm82 = vmand %vm78, %vm80
      %vm83 = vmor %vm73, %vm81
      %vm84 = vmor %vm74, %vm82
      %v85 = vsel %vm83, 2.8935185e-05, 0.0
      %v86 = vsel %vm84, 2.8935185e-05, 0.0
      %v89 = vcombine.low %v85, %v86
      %v91 = vunpack.c.l.s4 1966171168
      %v92 = vunpack.c.0.s8 %v91
      %v93 = vlaneseq
      %v94 = vshrl.u32 %v93, 7
      %v95 = vsub.s32 %v92, %v94
      %v96 = vrot.slane %v89, %v95
      %v98 = vunpack.c.l.s4 1966171168
      %v99 = vunpack.c.0.s8 %v98
      %v100 = vlaneseq
      %v101 = vshrl.u32 %v100, 7
      %v102 = vsub.s32 %v99, %v101
      %v103 = vrot.slane %v96, %v102
      %105 = vst.msk [vmem:[#allocation3] sm:$0x3] %vm30, %v103
      %106 = vrot.lane.b32.xlu0 %v34, 112
      %v107 = vpop.permute.xlu0 %106
      %108 = vrot.lane.b32.xlu0 %v35, 112
      %v109 = vpop.permute.xlu0 %108
      %vm110 = vcmp.lt.s32.totalorder %v34, 112
      %v111 = vsel %vm110, %v107, %v109
      %v112 = vsel %vm110, %v109, %v107
      %v113 = vadd.s32 %v34, 16
      %v114 = vadd.s32 %v35, 16
      %vm115 = vcmp.eq.s32.totalorder %v111, %v113
      %vm116 = vcmp.eq.s32.totalorder %v112, %v114
      %vm117 = vcmp.lt.s32.totalorder %v34, 240
      %vm118 = vcmp.lt.s32.totalorder %v35, 240
      %vm119 = vmand %vm115, %vm117
      %vm120 = vmand %vm116, %vm118
      %v121 = vsub.s32 %v34, 16
      %v122 = vsub.s32 %v35, 16
      %vm123 = vcmp.eq.s32.totalorder %v111, %v121
      %vm124 = vcmp.eq.s32.totalorder %v112, %v122
      %vm125 = vcmp.ge.s32.totalorder %v34, 16
      %vm126 = vcmp.ge.s32.totalorder %v35, 16
      %vm127 = vmand %vm123, %vm125
      %vm128 = vmand %vm124, %vm126
      %vm129 = vmor %vm119, %vm127
      %vm130 = vmor %vm120, %vm128
      %v131 = vsel %vm129, 2.8935185e-05, 0.0
      %v132 = vsel %vm130, 2.8935185e-05, 0.0
      %v135 = vcombine.low %v131, %v132
      %v137 = vunpack.c.l.s4 1966171168
      %v138 = vunpack.c.0.s8 %v137
      %v139 = vlaneseq
      %v140 = vshrl.u32 %v139, 7
      %v141 = vsub.s32 %v138, %v140
      %v142 = vrot.slane %v135, %v141
      %v144 = vunpack.c.l.s4 1966171168
      %v145 = vunpack.c.0.s8 %v144
      %v146 = vlaneseq
      %v147 = vshrl.u32 %v146, 7
      %v148 = vsub.s32 %v145, %v147
      %v149 = vrot.slane %v142, %v148
      %151 = vst.msk [vmem:[#allocation4] sm:$0x3] %vm30, %v149
    $region13: #{tpu_custom_call.1} parent=1 // pred_fallthru
      _
    %v152 = vld [vmem:[#allocation6] sm:$0xff]
    %v153 = vld [vmem:[#allocation6 + $0x8] sm:$0xff]
    %v154 = vld [vmem:[#allocation6 + $0x10] sm:$0xff]
    %v155 = vld [vmem:[#allocation6 + $0x18] sm:$0xff]
    %v156 = vld [vmem:[#allocation6 + $0x20] sm:$0xff]
    %v157 = vld [vmem:[#allocation6 + $0x28] sm:$0xff]
    %v158 = vld [vmem:[#allocation6 + $0x30] sm:$0xff]
    %v159 = vld [vmem:[#allocation6 + $0x38] sm:$0xff]
    %v160 = vld [vmem:[#allocation6 + $0x40] sm:$0xff]
    %v161 = vld [vmem:[#allocation6 + $0x48] sm:$0xff]
    %v162 = vld [vmem:[#allocation6 + $0x50] sm:$0xff]
    %v163 = vld [vmem:[#allocation6 + $0x58] sm:$0xff]
    %164 = vrot.lane.b32.xlu0 %v152, 127
    %v165 = vpop.permute.xlu0 %164
    %166 = vrot.lane.b32.xlu0 %v154, 127
    %v167 = vpop.permute.xlu0 %166
    %168 = vrot.lane.b32.xlu0 %v156, 127
    %v169 = vpop.permute.xlu0 %168
    %170 = vrot.lane.b32.xlu0 %v158, 127
    %v171 = vpop.permute.xlu0 %170
    %172 = vrot.lane.b32.xlu0 %v160, 127
    %v173 = vpop.permute.xlu0 %172
    %174 = vrot.lane.b32.xlu0 %v162, 127
    %v175 = vpop.permute.xlu0 %174
    %176 = vrot.lane.b32.xlu0 %v153, 127
    %v177 = vpop.permute.xlu0 %176
    %178 = vrot.lane.b32.xlu0 %v155, 127
    %v179 = vpop.permute.xlu0 %178
    %180 = vrot.lane.b32.xlu0 %v157, 127
    %v181 = vpop.permute.xlu0 %180
    %182 = vrot.lane.b32.xlu0 %v159, 127
    %v183 = vpop.permute.xlu0 %182
    %184 = vrot.lane.b32.xlu0 %v161, 127
    %v185 = vpop.permute.xlu0 %184
    %186 = vrot.lane.b32.xlu0 %v163, 127
    %v187 = vpop.permute.xlu0 %186
    %v188 = vlaneseq
    %v189 = vand.u32 %v188, 127
    %vm190 = vcmp.lt.s32.totalorder %v189, 127
    %v191 = vsel %vm190, %v165, %v177
    %v192 = vsel %vm190, %v167, %v179
    %v193 = vsel %vm190, %v169, %v181
    %v194 = vsel %vm190, %v171, %v183
    %v195 = vsel %vm190, %v173, %v185
    %v196 = vsel %vm190, %v175, %v187
    %v197 = vsel %vm190, %v177, %v165
    %v198 = vsel %vm190, %v179, %v167
    %v199 = vsel %vm190, %v181, %v169
    %v200 = vsel %vm190, %v183, %v171
    %v201 = vsel %vm190, %v185, %v173
    %v202 = vsel %vm190, %v187, %v175
    %v203 = vsub.f32 %v191, %v152
    %v204 = vsub.f32 %v197, %v153
    %v205 = vsub.f32 %v192, %v154
    %v206 = vsub.f32 %v198, %v155
    %v207 = vsub.f32 %v193, %v156
    %v208 = vsub.f32 %v199, %v157
    %v209 = vsub.f32 %v194, %v158
    %v210 = vsub.f32 %v200, %v159
    %v211 = vsub.f32 %v195, %v160
    %v212 = vsub.f32 %v201, %v161
    %v213 = vsub.f32 %v196, %v162
    %v214 = vsub.f32 %v202, %v163
    %v215 = vand.u32 2147483647, %v203
    %v216 = vand.u32 2147483647, %v204
    %v217 = vand.u32 2147483647, %v205
    %v218 = vand.u32 2147483647, %v206
    %v219 = vand.u32 2147483647, %v207
    %v220 = vand.u32 2147483647, %v208
    %v221 = vand.u32 2147483647, %v209
    %v222 = vand.u32 2147483647, %v210
    %v223 = vand.u32 2147483647, %v211
    %v224 = vand.u32 2147483647, %v212
    %v225 = vand.u32 2147483647, %v213
    %v226 = vand.u32 2147483647, %v214
    %227 = vrot.lane.b32.xlu0 %v152, 112
    %v228 = vpop.permute.xlu0 %227
    %229 = vrot.lane.b32.xlu0 %v154, 112
    %v230 = vpop.permute.xlu0 %229
    %231 = vrot.lane.b32.xlu0 %v156, 112
    %v232 = vpop.permute.xlu0 %231
    %233 = vrot.lane.b32.xlu0 %v158, 112
    %v234 = vpop.permute.xlu0 %233
    %235 = vrot.lane.b32.xlu0 %v160, 112
    %v236 = vpop.permute.xlu0 %235
    %237 = vrot.lane.b32.xlu0 %v162, 112
    %v238 = vpop.permute.xlu0 %237
    %239 = vrot.lane.b32.xlu0 %v153, 112
    %v240 = vpop.permute.xlu0 %239
    %241 = vrot.lane.b32.xlu0 %v155, 112
    %v242 = vpop.permute.xlu0 %241
    %243 = vrot.lane.b32.xlu0 %v157, 112
    %v244 = vpop.permute.xlu0 %243
    %245 = vrot.lane.b32.xlu0 %v159, 112
    %v246 = vpop.permute.xlu0 %245
    %247 = vrot.lane.b32.xlu0 %v161, 112
    %v248 = vpop.permute.xlu0 %247
    %249 = vrot.lane.b32.xlu0 %v163, 112
    %v250 = vpop.permute.xlu0 %249
    %vm251 = vcmp.lt.s32.totalorder %v189, 112
    %v252 = vsel %vm251, %v228, %v240
    %v253 = vsel %vm251, %v230, %v242
    %v254 = vsel %vm251, %v232, %v244
    %v255 = vsel %vm251, %v234, %v246
    %v256 = vsel %vm251, %v236, %v248
    %v257 = vsel %vm251, %v238, %v250
    %v258 = vsel %vm251, %v240, %v228
    %v259 = vsel %vm251, %v242, %v230
    %v260 = vsel %vm251, %v244, %v232
    %v261 = vsel %vm251, %v246, %v234
    %v262 = vsel %vm251, %v248, %v236
    %v263 = vsel %vm251, %v250, %v238
    %v264 = vsub.f32 %v252, %v152
    %v265 = vsub.f32 %v258, %v153
    %v266 = vsub.f32 %v253, %v154
    %v267 = vsub.f32 %v259, %v155
    %v268 = vsub.f32 %v254, %v156
    %v269 = vsub.f32 %v260, %v157
    %v270 = vsub.f32 %v255, %v158
    %v271 = vsub.f32 %v261, %v159
    %v272 = vsub.f32 %v256, %v160
    %v273 = vsub.f32 %v262, %v161
    %v274 = vsub.f32 %v257, %v162
    %v275 = vsub.f32 %v263, %v163
    %v276 = vand.u32 2147483647, %v264
    %v277 = vand.u32 2147483647, %v265
    %v278 = vand.u32 2147483647, %v266
    %v279 = vand.u32 2147483647, %v267
    %v280 = vand.u32 2147483647, %v268
    %v281 = vand.u32 2147483647, %v269
    %v282 = vand.u32 2147483647, %v270
    %v283 = vand.u32 2147483647, %v271
    %v284 = vand.u32 2147483647, %v272
    %v285 = vand.u32 2147483647, %v273
    %v286 = vand.u32 2147483647, %v274
    %v287 = vand.u32 2147483647, %v275
    %v288 = vrot.slane %v152, 7
    %v289 = vrot.slane %v153, 7
    %v290 = vrot.slane %v154, 7
    %v291 = vrot.slane %v155, 7
    %v292 = vrot.slane %v156, 7
    %v293 = vrot.slane %v157, 7
    %v294 = vrot.slane %v158, 7
    %v295 = vrot.slane %v159, 7
    %v296 = vrot.slane %v160, 7
    %v297 = vrot.slane %v161, 7
    %v298 = vrot.slane %v162, 7
    %v299 = vrot.slane %v163, 7
    %v300 = vlaneseq
    %v301 = vshrl.u32 %v300, 7
    %vm302 = vcmp.lt.s32.totalorder %v301, 1
    %v303 = vsel %vm302, %v296, %v298
    %v304 = vsel %vm302, %v297, %v299
    %v305 = vsel %vm302, %v294, %v296
    %v306 = vsel %vm302, %v295, %v297
    %v307 = vsel %vm302, %v292, %v294
    %v308 = vsel %vm302, %v293, %v295
    %v309 = vsel %vm302, %v290, %v292
    %v310 = vsel %vm302, %v291, %v293
    %v311 = vsel %vm302, %v288, %v290
    %v312 = vsel %vm302, %v289, %v291
    %v313 = vsel %vm302, %v298, %v288
    %v314 = vsel %vm302, %v299, %v289
    %v315 = vsub.f32 %v152, %v313
    %v316 = vsub.f32 %v153, %v314
    %v317 = vsub.f32 %v154, %v311
    %v318 = vsub.f32 %v155, %v312
    %v319 = vsub.f32 %v156, %v309
    %v320 = vsub.f32 %v157, %v310
    %v321 = vsub.f32 %v158, %v307
    %v322 = vsub.f32 %v159, %v308
    %v323 = vsub.f32 %v160, %v305
    %v324 = vsub.f32 %v161, %v306
    %v325 = vsub.f32 %v162, %v303
    %v326 = vsub.f32 %v163, %v304
    %v327 = vand.u32 2147483647, %v315
    %v328 = vand.u32 2147483647, %v316
    %v329 = vand.u32 2147483647, %v317
    %v330 = vand.u32 2147483647, %v318
    %v331 = vand.u32 2147483647, %v319
    %v332 = vand.u32 2147483647, %v320
    %v333 = vand.u32 2147483647, %v321
    %v334 = vand.u32 2147483647, %v322
    %v335 = vand.u32 2147483647, %v323
    %v336 = vand.u32 2147483647, %v324
    %v337 = vand.u32 2147483647, %v325
    %v338 = vand.u32 2147483647, %v326
    %v339 = vadd.s32 %v301, 8
    %v340 = vadd.s32 %v301, 16
    %v341 = vadd.s32 %v301, 24
    %v342 = vadd.s32 %v301, 32
    %v343 = vadd.s32 %v301, 40
    %s344 = smul.u32 0, 48
    %v345 = vstv %s344
    %v346 = vadd.s32 %v301, %v345
    %v347 = vadd.s32 %v339, %v345
    %v348 = vadd.s32 %v340, %v345
    %v349 = vadd.s32 %v341, %v345
    %v350 = vadd.s32 %v342, %v345
    %v351 = vadd.s32 %v343, %v345
    %v352 = vrot.slane %v301, 7
    %v353 = vrot.slane %v339, 7
    %v354 = vrot.slane %v340, 7
    %v355 = vrot.slane %v341, 7
    %v356 = vrot.slane %v342, 7
    %v357 = vrot.slane %v343, 7
    %v358 = vsel %vm302, %v356, %v357
    %v359 = vsel %vm302, %v355, %v356
    %v360 = vsel %vm302, %v354, %v355
    %v361 = vsel %vm302, %v353, %v354
    %v362 = vsel %vm302, %v352, %v353
    %v363 = vsel %vm302, %v357, %v352
    %v364 = vsub.s32 %v301, 1
    %v365 = vsub.s32 %v339, 1
    %v366 = vsub.s32 %v340, 1
    %v367 = vsub.s32 %v341, 1
    %v368 = vsub.s32 %v342, 1
    %v369 = vsub.s32 %v343, 1
    %vm370 = vcmp.eq.s32.totalorder %v363, %v364
    %vm371 = vcmp.eq.s32.totalorder %v362, %v365
    %vm372 = vcmp.eq.s32.totalorder %v361, %v366
    %vm373 = vcmp.eq.s32.totalorder %v360, %v367
    %vm374 = vcmp.eq.s32.totalorder %v359, %v368
    %vm375 = vcmp.eq.s32.totalorder %v358, %v369
    %vm376 = vcmp.lt.s32.totalorder %v346, 0
    %v377 = vsub.s32 0, %v346
    %v378 = vsel %vm376, %v377, %v346
    %v379 = vshrl.u32 %v378, 3
    %v380 = vand.u32 %v378, 7
    %v381 = vsub.s32 0, %v380
    %v382 = vsel %vm376, %v381, %v380
    %vm383 = vcmp.lt.s32.totalorder %v347, 0
    %v384 = vsub.s32 0, %v347
    %v385 = vsel %vm383, %v384, %v347
    %v386 = vshrl.u32 %v385, 3
    %v387 = vand.u32 %v385, 7
    %v388 = vsub.s32 0, %v387
    %v389 = vsel %vm383, %v388, %v387
    %vm390 = vcmp.lt.s32.totalorder %v348, 0
    %v391 = vsub.s32 0, %v348
    %v392 = vsel %vm390, %v391, %v348
    %v393 = vshrl.u32 %v392, 3
    %v394 = vand.u32 %v392, 7
    %v395 = vsub.s32 0, %v394
    %v396 = vsel %vm390, %v395, %v394
    %vm397 = vcmp.lt.s32.totalorder %v349, 0
    %v398 = vsub.s32 0, %v349
    %v399 = vsel %vm397, %v398, %v349
    %v400 = vshrl.u32 %v399, 3
    %v401 = vand.u32 %v399, 7
    %v402 = vsub.s32 0, %v401
    %v403 = vsel %vm397, %v402, %v401
    %vm404 = vcmp.lt.s32.totalorder %v350, 0
    %v405 = vsub.s32 0, %v350
    %v406 = vsel %vm404, %v405, %v350
    %v407 = vshrl.u32 %v406, 3
    %v408 = vand.u32 %v406, 7
    %v409 = vsub.s32 0, %v408
    %v410 = vsel %vm404, %v409, %v408
    %vm411 = vcmp.lt.s32.totalorder %v351, 0
    %v412 = vsub.s32 0, %v351
    %v413 = vsel %vm411, %v412, %v351
    %v414 = vshrl.u32 %v413, 3
    %v415 = vand.u32 %v413, 7
    %v416 = vsub.s32 0, %v415
    %v417 = vsel %vm411, %v416, %v415
    %vm418 = vcmp.ne.s32.totalorder %v382, 0
    %vm419 = vcmp.ne.s32.totalorder %v389, 0
    %vm420 = vcmp.ne.s32.totalorder %v396, 0
    %vm421 = vcmp.ne.s32.totalorder %v403, 0
    %vm422 = vcmp.ne.s32.totalorder %v410, 0
    %vm423 = vcmp.ne.s32.totalorder %v417, 0
    %vm424 = vcmp.lt.s32.totalorder %v382, 0
    %vm425 = vcmp.lt.s32.totalorder %v389, 0
    %vm426 = vcmp.lt.s32.totalorder %v396, 0
    %vm427 = vcmp.lt.s32.totalorder %v403, 0
    %vm428 = vcmp.lt.s32.totalorder %v410, 0
    %vm429 = vcmp.lt.s32.totalorder %v417, 0
    %vm430 = vmand %vm424, %vm418
    %vm431 = vmand %vm425, %vm419
    %vm432 = vmand %vm426, %vm420
    %vm433 = vmand %vm427, %vm421
    %vm434 = vmand %vm428, %vm422
    %vm435 = vmand %vm429, %vm423
    %v436 = vadd.s32 %v382, 8
    %v437 = vadd.s32 %v389, 8
    %v438 = vadd.s32 %v396, 8
    %v439 = vadd.s32 %v403, 8
    %v440 = vadd.s32 %v410, 8
    %v441 = vadd.s32 %v417, 8
    %v442 = vsel %vm430, %v436, %v382
    %v443 = vsel %vm431, %v437, %v389
    %v444 = vsel %vm432, %v438, %v396
    %v445 = vsel %vm433, %v439, %v403
    %v446 = vsel %vm434, %v440, %v410
    %v447 = vsel %vm435, %v441, %v417
    %vm448 = vcmp.ne.s32.totalorder %v442, 0
    %vm449 = vcmp.ne.s32.totalorder %v443, 0
    %vm450 = vcmp.ne.s32.totalorder %v444, 0
    %vm451 = vcmp.ne.s32.totalorder %v445, 0
    %vm452 = vcmp.ne.s32.totalorder %v446, 0
    %vm453 = vcmp.ne.s32.totalorder %v447, 0
    %vm454 = vmand %vm370, %vm448
    %vm455 = vmand %vm371, %vm449
    %vm456 = vmand %vm372, %vm450
    %vm457 = vmand %vm373, %vm451
    %vm458 = vmand %vm374, %vm452
    %vm459 = vmand %vm375, %vm453
    %v460 = vadd.s32 %v301, 1
    %v461 = vadd.s32 %v339, 1
    %v462 = vadd.s32 %v340, 1
    %v463 = vadd.s32 %v341, 1
    %v464 = vadd.s32 %v342, 1
    %v465 = vadd.s32 %v343, 1
    %vm466 = vcmp.eq.s32.totalorder %v363, %v460
    %vm467 = vcmp.eq.s32.totalorder %v362, %v461
    %vm468 = vcmp.eq.s32.totalorder %v361, %v462
    %vm469 = vcmp.eq.s32.totalorder %v360, %v463
    %vm470 = vcmp.eq.s32.totalorder %v359, %v464
    %vm471 = vcmp.eq.s32.totalorder %v358, %v465
    %v472 = vadd.s32 %v346, 1
    %v473 = vadd.s32 %v347, 1
    %v474 = vadd.s32 %v348, 1
    %v475 = vadd.s32 %v349, 1
    %v476 = vadd.s32 %v350, 1
    %v477 = vadd.s32 %v351, 1
    %vm478 = vcmp.lt.s32.totalorder %v472, 0
    %v479 = vsub.s32 0, %v472
    %v480 = vsel %vm478, %v479, %v472
    %v481 = vshrl.u32 %v480, 3
    %v482 = vand.u32 %v480, 7
    %v483 = vsub.s32 0, %v482
    %v484 = vsel %vm478, %v483, %v482
    %vm485 = vcmp.lt.s32.totalorder %v473, 0
    %v486 = vsub.s32 0, %v473
    %v487 = vsel %vm485, %v486, %v473
    %v488 = vshrl.u32 %v487, 3
    %v489 = vand.u32 %v487, 7
    %v490 = vsub.s32 0, %v489
    %v491 = vsel %vm485, %v490, %v489
    %vm492 = vcmp.lt.s32.totalorder %v474, 0
    %v493 = vsub.s32 0, %v474
    %v494 = vsel %vm492, %v493, %v474
    %v495 = vshrl.u32 %v494, 3
    %v496 = vand.u32 %v494, 7
    %v497 = vsub.s32 0, %v496
    %v498 = vsel %vm492, %v497, %v496
    %vm499 = vcmp.lt.s32.totalorder %v475, 0
    %v500 = vsub.s32 0, %v475
    %v501 = vsel %vm499, %v500, %v475
    %v502 = vshrl.u32 %v501, 3
    %v503 = vand.u32 %v501, 7
    %v504 = vsub.s32 0, %v503
    %v505 = vsel %vm499, %v504, %v503
    %vm506 = vcmp.lt.s32.totalorder %v476, 0
    %v507 = vsub.s32 0, %v476
    %v508 = vsel %vm506, %v507, %v476
    %v509 = vshrl.u32 %v508, 3
    %v510 = vand.u32 %v508, 7
    %v511 = vsub.s32 0, %v510
    %v512 = vsel %vm506, %v511, %v510
    %vm513 = vcmp.lt.s32.totalorder %v477, 0
    %v514 = vsub.s32 0, %v477
    %v515 = vsel %vm513, %v514, %v477
    %v516 = vshrl.u32 %v515, 3
    %v517 = vand.u32 %v515, 7
    %v518 = vsub.s32 0, %v517
    %v519 = vsel %vm513, %v518, %v517
    %vm520 = vcmp.ne.s32.totalorder %v484, 0
    %vm521 = vcmp.ne.s32.totalorder %v491, 0
    %vm522 = vcmp.ne.s32.totalorder %v498, 0
    %vm523 = vcmp.ne.s32.totalorder %v505, 0
    %vm524 = vcmp.ne.s32.totalorder %v512, 0
    %vm525 = vcmp.ne.s32.totalorder %v519, 0
    %vm526 = vcmp.lt.s32.totalorder %v484, 0
    %vm527 = vcmp.lt.s32.totalorder %v491, 0
    %vm528 = vcmp.lt.s32.totalorder %v498, 0
    %vm529 = vcmp.lt.s32.totalorder %v505, 0
    %vm530 = vcmp.lt.s32.totalorder %v512, 0
    %vm531 = vcmp.lt.s32.totalorder %v519, 0
    %vm532 = vmand %vm526, %vm520
    %vm533 = vmand %vm527, %vm521
    %vm534 = vmand %vm528, %vm522
    %vm535 = vmand %vm529, %vm523
    %vm536 = vmand %vm530, %vm524
    %vm537 = vmand %vm531, %vm525
    %v538 = vadd.s32 %v484, 8
    %v539 = vadd.s32 %v491, 8
    %v540 = vadd.s32 %v498, 8
    %v541 = vadd.s32 %v505, 8
    %v542 = vadd.s32 %v512, 8
    %v543 = vadd.s32 %v519, 8
    %v544 = vsel %vm532, %v538, %v484
    %v545 = vsel %vm533, %v539, %v491
    %v546 = vsel %vm534, %v540, %v498
    %v547 = vsel %vm535, %v541, %v505
    %v548 = vsel %vm536, %v542, %v512
    %v549 = vsel %vm537, %v543, %v519
    %vm550 = vcmp.ne.s32.totalorder %v544, 0
    %vm551 = vcmp.ne.s32.totalorder %v545, 0
    %vm552 = vcmp.ne.s32.totalorder %v546, 0
    %vm553 = vcmp.ne.s32.totalorder %v547, 0
    %vm554 = vcmp.ne.s32.totalorder %v548, 0
    %vm555 = vcmp.ne.s32.totalorder %v549, 0
    %vm556 = vmand %vm466, %vm550
    %vm557 = vmand %vm467, %vm551
    %vm558 = vmand %vm468, %vm552
    %vm559 = vmand %vm469, %vm553
    %vm560 = vmand %vm470, %vm554
    %vm561 = vmand %vm471, %vm555
    %vm562 = vmor %vm454, %vm556
    %vm563 = vmor %vm455, %vm557
    %vm564 = vmor %vm456, %vm558
    %vm565 = vmor %vm457, %vm559
    %vm566 = vmor %vm458, %vm560
    %vm567 = vmor %vm459, %vm561
    %v568 = vsel %vm562, 3.1001986e-05, 0.0
    %v569 = vsel %vm563, 3.1001986e-05, 0.0
    %v570 = vsel %vm564, 3.1001986e-05, 0.0
    %v571 = vsel %vm565, 3.1001986e-05, 0.0
    %v572 = vsel %vm566, 3.1001986e-05, 0.0
    %v573 = vsel %vm567, 3.1001986e-05, 0.0
    %p574 = scmp.lt.s32.totalorder %s344, 0
    %s575 = ssub.s32 0, %s344
    %s576 = scalar_select %p574, %s575, %s344
    %s577 = sand.u32 %s576, 7
    %s578 = ssub.s32 0, %s577
    %s579 = scalar_select %p574, %s578, %s577
    %p580 = scmp.ne.s32.totalorder %s579, 0
    %p581 = scmp.lt.s32.totalorder %s579, 0
    %p582 = pnand %p581, %p580
    %p583 = pneg %p582
    %s584 = sadd.s32 %s579, 8
    %s585 = scalar_select %p583, %s584, %s579
    %p586 = scmp.eq.s32.totalorder %s585, 0
    %s587 = scalar_select %p586, 0.0, 3.1001986e-05
    %v588 = vld [vmem:[#allocation5] sm:$0x3]
    %v590 = vlaneseq
    %v591 = vshrl.u32 %v590, 7
    %v592 = vsub.s32 0, %v591
    %v593 = vrot.slane %v588, %v592
    %v594 = vlaneseq
    %v595 = vshrl.u32 %v594, 7
    %v596 = vsub.s32 1, %v595
    %v597 = vrot.slane %v588, %v596
    %v600 = vsub.f32 %v152, %v593
    %v601 = vsub.f32 %v153, %v597
    %v602 = vand.u32 2147483647, %v600
    %v603 = vand.u32 2147483647, %v601
    %v604 = vadd.f32 %v215, %v217
    %v605 = vadd.f32 %v604, %v219
    %v606 = vadd.f32 %v605, %v221
    %v607 = vadd.f32 %v606, %v223
    %v608 = vadd.f32 %v607, %v225
    %v609 = vrot.slane %v608, 4
    %v610 = vadd.f32 %v608, %v609
    %v611 = vrot.slane %v610, 2
    %v612 = vadd.f32 %v610, %v611
    %v613 = vrot.slane %v612, 1
    %v614 = vadd.f32 %v612, %v613
    %v615 = vadd.f32 %v216, %v218
    %v616 = vadd.f32 %v615, %v220
    %v617 = vadd.f32 %v616, %v222
    %v618 = vadd.f32 %v617, %v224
    %v619 = vadd.f32 %v618, %v226
    %v620 = vrot.slane %v619, 4
    %v621 = vadd.f32 %v619, %v620
    %v622 = vrot.slane %v621, 2
    %v623 = vadd.f32 %v621, %v622
    %v624 = vrot.slane %v623, 1
    %v625 = vadd.f32 %v623, %v624
    %v626 = vadd.f32 %v276, %v278
    %v627 = vadd.f32 %v626, %v280
    %v628 = vadd.f32 %v627, %v282
    %v629 = vadd.f32 %v628, %v284
    %v630 = vadd.f32 %v629, %v286
    %v631 = vrot.slane %v630, 4
    %v632 = vadd.f32 %v630, %v631
    %v633 = vrot.slane %v632, 2
    %v634 = vadd.f32 %v632, %v633
    %v635 = vrot.slane %v634, 1
    %v636 = vadd.f32 %v634, %v635
    %v637 = vadd.f32 %v277, %v279
    %v638 = vadd.f32 %v637, %v281
    %v639 = vadd.f32 %v638, %v283
    %v640 = vadd.f32 %v639, %v285
    %v641 = vadd.f32 %v640, %v287
    %v642 = vrot.slane %v641, 4
    %v643 = vadd.f32 %v641, %v642
    %v644 = vrot.slane %v643, 2
    %v645 = vadd.f32 %v643, %v644
    %v646 = vrot.slane %v645, 1
    %v647 = vadd.f32 %v645, %v646
    %649 = vset.pattern.permute.xlu0 0
    %650 = vperm.xlu0 %649, %v568
    %v651 = vpop.permute.xlu0 %650
    %654 = vset.pattern.permute.xlu0 0
    %655 = vperm.xlu0 %654, %v569
    %v656 = vpop.permute.xlu0 %655
    %659 = vset.pattern.permute.xlu0 0
    %660 = vperm.xlu0 %659, %v570
    %v661 = vpop.permute.xlu0 %660
    %664 = vset.pattern.permute.xlu0 0
    %665 = vperm.xlu0 %664, %v571
    %v666 = vpop.permute.xlu0 %665
    %669 = vset.pattern.permute.xlu0 0
    %670 = vperm.xlu0 %669, %v572
    %v671 = vpop.permute.xlu0 %670
    %674 = vset.pattern.permute.xlu0 0
    %675 = vperm.xlu0 %674, %v573
    %v676 = vpop.permute.xlu0 %675
    %v678 = vmul.f32 %v327, %v651
    %v679 = vmul.f32 %v328, %v651
    %v680 = vmul.f32 %v329, %v656
    %v681 = vmul.f32 %v330, %v656
    %v682 = vmul.f32 %v331, %v661
    %v683 = vmul.f32 %v332, %v661
    %v684 = vmul.f32 %v333, %v666
    %v685 = vmul.f32 %v334, %v666
    %v686 = vmul.f32 %v335, %v671
    %v687 = vmul.f32 %v336, %v671
    %v688 = vmul.f32 %v337, %v676
    %v689 = vmul.f32 %v338, %v676
    %v690 = vadd.f32 %v678, %v680
    %v691 = vadd.f32 %v690, %v682
    %v692 = vadd.f32 %v691, %v684
    %v693 = vadd.f32 %v692, %v686
    %v694 = vadd.f32 %v693, %v688
    %v695 = vrot.slane %v694, 4
    %v696 = vadd.f32 %v694, %v695
    %v697 = vrot.slane %v696, 2
    %v698 = vadd.f32 %v696, %v697
    %v699 = vrot.slane %v698, 1
    %v700 = vadd.f32 %v698, %v699
    %v701 = vadd.f32 %v679, %v681
    %v702 = vadd.f32 %v701, %v683
    %v703 = vadd.f32 %v702, %v685
    %v704 = vadd.f32 %v703, %v687
    %v705 = vadd.f32 %v704, %v689
    %v706 = vrot.slane %v705, 4
    %v707 = vadd.f32 %v705, %v706
    %v708 = vrot.slane %v707, 2
    %v709 = vadd.f32 %v707, %v708
    %v710 = vrot.slane %v709, 1
    %v711 = vadd.f32 %v709, %v710
    %v712 = vld [vmem:[#allocation2] sm:$0x3]
    %v713 = vld [vmem:[#allocation3] sm:$0x3]
    %v715 = vlaneseq
    %v716 = vshrl.u32 %v715, 7
    %v717 = vsub.s32 0, %v716
    %v718 = vrot.slane %v713, %v717
    %v719 = vlaneseq
    %v720 = vshrl.u32 %v719, 7
    %v721 = vsub.s32 1, %v720
    %v722 = vrot.slane %v713, %v721
    %v725 = vmul.f32 %v614, %v718
    %v726 = vmul.f32 %v625, %v722
    %v729 = vcombine.low %v725, %v726
    %v731 = vunpack.c.l.s4 1966171168
    %v732 = vunpack.c.0.s8 %v731
    %v733 = vlaneseq
    %v734 = vshrl.u32 %v733, 7
    %v735 = vsub.s32 %v732, %v734
    %v736 = vrot.slane %v729, %v735
    %v738 = vunpack.c.l.s4 1966171168
    %v739 = vunpack.c.0.s8 %v738
    %v740 = vlaneseq
    %v741 = vshrl.u32 %v740, 7
    %v742 = vsub.s32 %v739, %v741
    %v743 = vrot.slane %v736, %v742
    %v745 = vadd.f32 %v712, %v743
    %v746 = vld [vmem:[#allocation4] sm:$0x3]
    %v748 = vlaneseq
    %v749 = vshrl.u32 %v748, 7
    %v750 = vsub.s32 0, %v749
    %v751 = vrot.slane %v746, %v750
    %v752 = vlaneseq
    %v753 = vshrl.u32 %v752, 7
    %v754 = vsub.s32 1, %v753
    %v755 = vrot.slane %v746, %v754
    %v758 = vmul.f32 %v636, %v751
    %v759 = vmul.f32 %v647, %v755
    %v762 = vcombine.low %v758, %v759
    %v764 = vunpack.c.l.s4 1966171168
    %v765 = vunpack.c.0.s8 %v764
    %v766 = vlaneseq
    %v767 = vshrl.u32 %v766, 7
    %v768 = vsub.s32 %v765, %v767
    %v769 = vrot.slane %v762, %v768
    %v771 = vunpack.c.l.s4 1966171168
    %v772 = vunpack.c.0.s8 %v771
    %v773 = vlaneseq
    %v774 = vshrl.u32 %v773, 7
    %v775 = vsub.s32 %v772, %v774
    %v776 = vrot.slane %v769, %v775
    %v778 = vadd.f32 %v745, %v776
    %v781 = vcombine.low %v700, %v711
    %v783 = vunpack.c.l.s4 1966171168
    %v784 = vunpack.c.0.s8 %v783
    %v785 = vlaneseq
    %v786 = vshrl.u32 %v785, 7
    %v787 = vsub.s32 %v784, %v786
    %v788 = vrot.slane %v781, %v787
    %v790 = vunpack.c.l.s4 1966171168
    %v791 = vunpack.c.0.s8 %v790
    %v792 = vlaneseq
    %v793 = vshrl.u32 %v792, 7
    %v794 = vsub.s32 %v791, %v793
    %v795 = vrot.slane %v788, %v794
    %v797 = vadd.f32 %v778, %v795
    %v798 = vstv %s587
    %v799 = vmul.f32 %v602, %v798
    %v800 = vmul.f32 %v603, %v798
    %v803 = vcombine.low %v799, %v800
    %v805 = vunpack.c.l.s4 1966171168
    %v806 = vunpack.c.0.s8 %v805
    %v807 = vlaneseq
    %v808 = vshrl.u32 %v807, 7
    %v809 = vsub.s32 %v806, %v808
    %v810 = vrot.slane %v803, %v809
    %v812 = vunpack.c.l.s4 1966171168
    %v813 = vunpack.c.0.s8 %v812
    %v814 = vlaneseq
    %v815 = vshrl.u32 %v814, 7
    %v816 = vsub.s32 %v813, %v815
    %v817 = vrot.slane %v810, %v816
    %v819 = vadd.f32 %v797, %v817
    %v820 = vlaneseq
    %vm821 = vcmp.ge.s32.totalorder %v820, 0
    %vm822 = vcmp.lt.s32.totalorder %v820, 256
    %vm823 = vmand %vm821, %vm822
    %824 = vst.msk [vmem:[#allocation2] sm:$0x3] %vm823, %v819
    %v827 = vcombine.high %v162, %v163
    %v829 = vunpack.c.l.s4 1966171168
    %v830 = vunpack.c.0.s8 %v829
    %v831 = vlaneseq
    %v832 = vshrl.u32 %v831, 7
    %v833 = vsub.s32 %v830, %v832
    %v834 = vrot.slane %v827, %v833
    %v835 = vcombine.high %v834, %v834
    %v837 = vunpack.c.l.s4 1966171168
    %v838 = vunpack.c.0.s8 %v837
    %v839 = vlaneseq
    %v840 = vshrl.u32 %v839, 7
    %v841 = vsub.s32 %v838, %v840
    %v842 = vrot.slane %v835, %v841
    %v843 = vcombine.high %v842, %v842
    %845 = vst.msk [vmem:[#allocation5] sm:$0x3] %vm823, %v843
    // Predicated region
    $region14: #{tpu_custom_call.1} parent=1 // pred_check
      %p846 = pneg %p23
    $region15: #{tpu_custom_call.1} parent=1 // pred_check_branch
      %848 = sbr.rel (%p846) target = $region17
    $region16: #{tpu_custom_call.1} parent=1 // pred_region
      %v849 = vld [vmem:[#allocation2] sm:$0x3]
      %v851 = vlaneseq
      %v852 = vshrl.u32 %v851, 7
      %v853 = vsub.s32 0, %v852
      %v854 = vrot.slane %v849, %v853
      %v855 = vlaneseq
      %v856 = vshrl.u32 %v855, 7
      %v857 = vsub.s32 1, %v856
      %v858 = vrot.slane %v849, %v857
      %vm861 = vcmask 1040384
      %v862 = vsel %vm861, %v854, 0.0
      %v863 = vsel %vm861, %v858, 0.0
      %v864 = vadd.f32 %v862, %v863
      %865 = vadd.xlane.f32.xlu0 %v864
      %v866 = vpop.xlane.xlu0 %865
      %v867 = vrot.slane %v866, 4
      %v868 = vadd.f32 %v866, %v867
      %v869 = vrot.slane %v868, 2
      %v870 = vadd.f32 %v868, %v869
      %v871 = vrot.slane %v870, 1
      %v872 = vadd.f32 %v870, %v871
      %s873 = vtos %v872
      %v874 = vstv %s873
      %vm875 = vcmask 0
      %876 = vst.msk [vmem:[#allocation9] sm:$0x1] %vm875, %v874
    $region17: #{tpu_custom_call.1} parent=1 // pred_fallthru
      _
    // Predicated region
    $region18: #{tpu_custom_call.1} parent=1 // pred_check
      _
    $region19: #{tpu_custom_call.1} parent=1 // pred_check_branch
      %878 = sbr.rel (0) target = $region21
    $region20: #{tpu_custom_call.1} parent=1 // pred_region
      %s880 = ssub.s32 16, 16
      %881 = vsyncadd [#allocation8], %s880
      %s883 = sshll.u32 [#allocation9], 4
      %s884 = int_to_ptr.vmem [resolvable:$true] %s883
      %886 = dma.vmem_to_hbm [thread:$0]  %s884, 16, %s1, [#allocation8]
    $region21: #{tpu_custom_call.1} parent=1 // pred_fallthru
      _
    // Predicated region
    $region22: #{tpu_custom_call.1} parent=1 // pred_check
      _
    $region23: #{tpu_custom_call.1} parent=1 // pred_check_branch
      %888 = sbr.rel (0) target = $region25
    $region24: #{tpu_custom_call.1} parent=1 // pred_region
      %889 = dma.done [#allocation8], 16
    $region25: #{tpu_custom_call.1} parent=1 // pred_fallthru
      _
    %890 = vsyncpa [#allocation7], 1
    %891 = vsyncpa [#allocation8], 1

</llo_original>
